<compile_context>
chip_gen: v6e
topology: v6e:2x2x1
jax: 0.10.0
libtpu: 0.0.40
codegen_flags: <defaults>
</compile_context>

<pallas_src>
import functools

import jax
import jax.numpy as jnp
from jax.experimental import pallas as pl
from jax.experimental.pallas import tpu as pltpu

LANE = 128


def _round_up(x, m):
    return ((x + m - 1) // m) * m


# ----------------------------------------------------------------------------
# Pallas kernel: folded linears + bias + lane-dense atom softmax
# ----------------------------------------------------------------------------
def _ts_fused_kernel(sup_ref, ori_ref, stat_ref,
                     w_sup_ref, w_ori_ref, w_stat_ref, b_ref, gmat_ref,
                     out_ref, *, num_atoms):
    # Three accumulated GEMMs; mean-pool + sub-extractor linears + concat +
    # head linear are all folded into the (resident) weights offline.
    y = jnp.dot(sup_ref[...], w_sup_ref[...],
                preferred_element_type=jnp.float32)
    y = y + jnp.dot(ori_ref[...], w_ori_ref[...],
                    preferred_element_type=jnp.float32)
    y = y + jnp.dot(stat_ref[...], w_stat_ref[...],
                    preferred_element_type=jnp.float32)
    y = y + b_ref[...]                                    # (tb, A_pad)

    if num_atoms > 1:
        # Grouped softmax in the lane-dense layout (no (tb, G, atoms) relayout).
        # Row max is a valid stabilizer for every atom group; the per-group
        # sum-of-exp is a block-diagonal 0/1 matmul on the MXU, which also
        # broadcasts the denominator back to every lane of its group.
        m = jnp.max(y, axis=-1, keepdims=True)            # XLU lane reduce
        e = jnp.exp(y - m)                                 # EUP
        denom = jnp.dot(e, gmat_ref[...],
                        preferred_element_type=jnp.float32)
        y = e / denom                                      # exact division

    out_ref[...] = y.astype(out_ref.dtype)


# ----------------------------------------------------------------------------
# Tiling helpers
# ----------------------------------------------------------------------------
def _pick_tile_b(b_rows, bytes_per_row, io_budget_bytes=8 << 20):
    """Largest multiple-of-8 batch tile whose double-buffered I/O fits the
    budget (capped at 4096), with >=2 grid steps whenever the batch allows so
    the "parallel" batch axis can split across v7x's two TensorCores."""
    max_tile = min(4096, max(8, io_budget_bytes // (2 * bytes_per_row)))
    if b_rows <= 8:
        return 8
    min_steps = 2 if b_rows >= 16 else 1
    nb = max(min_steps, -(-b_rows // max_tile))
    return _round_up(-(-b_rows // nb), 8)


# ----------------------------------------------------------------------------
# Fused head: one pallas_call for the whole forward
# ----------------------------------------------------------------------------
def ts_feature_head_fused(sup_node, ori_node, statistic, folded, *, num_atoms):
    w_sup_big = folded["w_sup_big"]     # (N_sup*DN, A_pad)
    w_ori_big = folded["w_ori_big"]     # (N_ori*DN, A_pad)
    w_stat_pad = folded["w_stat_pad"]   # (DS, A_pad)
    b_pad = folded["b_pad"]             # (1, A_pad)
    gmat = folded["gmat"]               # (A_pad, A_pad)
    action_dim = folded["action_dim"]

    bsz, n_sup, dn_sup = sup_node.shape
    _, n_ori, dn_ori = ori_node.shape
    ds = statistic.shape[1]
    k_sup = n_sup * dn_sup
    k_ori = n_ori * dn_ori
    a_pad = w_sup_big.shape[1]
    assert w_ori_big.shape == (k_ori, a_pad)
    assert w_stat_pad.shape == (ds, a_pad)

    # Flatten node tensors (free row-major reshape); the mean-pool lives in
    # the tiled/scaled weights, so each graph input becomes one K=N*DN GEMM.
    # (bf16 node features also work here if numerics allow: the only
    # elementwise work on them is the MXU contraction.)
    sup_flat = sup_node.reshape(bsz, k_sup)
    ori_flat = ori_node.reshape(bsz, k_ori)

    bytes_per_row = 4 * (_round_up(k_sup, LANE) + _round_up(k_ori, LANE)
                         + _round_up(ds, LANE) + a_pad)
    tile_b = _pick_tile_b(bsz, bytes_per_row)
    nb = -(-bsz // tile_b)
    b_rows = nb * tile_b
    if b_rows != bsz:                       # pad awkward batch sizes
        pad = b_rows - bsz
        sup_flat = jnp.pad(sup_flat, ((0, pad), (0, 0)))
        ori_flat = jnp.pad(ori_flat, ((0, pad), (0, 0)))
        statistic = jnp.pad(statistic, ((0, pad), (0, 0)))

    weight_bytes = 4 * a_pad * (k_sup + k_ori + _round_up(ds, 8) + 8 + a_pad)
    vmem_limit = int(min(max(2 * tile_b * bytes_per_row + 2 * weight_bytes
                             + (2 << 20), 16 << 20), 48 << 20))

    kernel = functools.partial(_ts_fused_kernel, num_atoms=num_atoms)

    out2d = pl.pallas_call(
        kernel,
        out_shape=jax.ShapeDtypeStruct((b_rows, a_pad), jnp.float32),
        grid_spec=pltpu.PrefetchScalarGridSpec(
            num_scalar_prefetch=0,
            grid=(nb,),
            in_specs=[
                pl.BlockSpec((tile_b, k_sup), lambda i: (i, 0)),
                pl.BlockSpec((tile_b, k_ori), lambda i: (i, 0)),
                pl.BlockSpec((tile_b, ds), lambda i: (i, 0)),
                # Weights / bias / group matrix: same block every grid step ->
                # stay resident in VMEM.
                pl.BlockSpec((k_sup, a_pad), lambda i: (0, 0)),
                pl.BlockSpec((k_ori, a_pad), lambda i: (0, 0)),
                pl.BlockSpec((ds, a_pad), lambda i: (0, 0)),
                pl.BlockSpec((1, a_pad), lambda i: (0, 0)),
                pl.BlockSpec((a_pad, a_pad), lambda i: (0, 0)),
            ],
            out_specs=pl.BlockSpec((tile_b, a_pad), lambda i: (i, 0)),
        ),
        compiler_params=pltpu.CompilerParams(
            dimension_semantics=("parallel",),
            vmem_limit_bytes=vmem_limit),
    )(sup_flat, ori_flat, statistic,
      w_sup_big, w_ori_big, w_stat_pad, b_pad, gmat)

    out = out2d[:bsz, :action_dim]
    if num_atoms > 1:
        # Row-major view; matches torch `x.view(bsz, -1, num_atoms)`.
        out = out.reshape(bsz, action_dim // num_atoms, num_atoms)
    return out


# ----------------------------------------------------------------------------
# Parameter folding (offline, exact for linear sub-extractors)
# ----------------------------------------------------------------------------
def fold_params(w_sup, b_sup, w_ori, b_ori, w_stat, b_stat, w_lin, b_lin,
                *, n_sup, n_ori, num_atoms):
    """Folds mean-pool + sub-extractor linears + concat into the final Linear.

    concat([mean(sup) @ w_sup + b_sup, mean(ori) @ w_ori + b_ori,
            s @ w_stat + b_stat]) @ w_lin + b_lin
      ==  sup_flat @ W_sup_big + ori_flat @ W_ori_big + s @ W_stat_fold + b_fold
    where W_sup_big = tile(w_sup @ W1, (N, 1)) / N, etc.
    Outputs are zero-padded to 128 lanes (kernel stores lane-dense).
    """
    f_sup, f_ori = w_sup.shape[1], w_ori.shape[1]
    action_dim = w_lin.shape[1]
    if num_atoms > 1:
        assert action_dim % num_atoms == 0

    w1 = w_lin[:f_sup]
    w2 = w_lin[f_sup:f_sup + f_ori]
    w3 = w_lin[f_sup + f_ori:]
    w_sup_fold = w_sup @ w1                               # (DN_sup, A)
    w_ori_fold = w_ori @ w2                               # (DN_ori, A)
    w_stat_fold = w_stat @ w3                             # (DS, A)
    b_fold = b_lin.reshape(-1) + b_sup @ w1 + b_ori @ w2 + b_stat @ w3

    # Fold the mean-pool over nodes: wrapper flattens (B,N,DN)->(B,N*DN).
    w_sup_big = jnp.tile(w_sup_fold, (n_sup, 1)) / n_sup  # (N_sup*DN, A)
    w_ori_big = jnp.tile(w_ori_fold, (n_ori, 1)) / n_ori  # (N_ori*DN, A)

    # Pad output dim to a lane-dense multiple of 128.
    a_pad = _round_up(max(action_dim, LANE), LANE)
    pad = a_pad - action_dim
    w_sup_big = jnp.pad(w_sup_big, ((0, 0), (0, pad)))
    w_ori_big = jnp.pad(w_ori_big, ((0, 0), (0, pad)))
    w_stat_pad = jnp.pad(w_stat_fold, ((0, 0), (0, pad)))
    b_pad = jnp.pad(b_fold, (0, pad)).reshape(1, a_pad)

    # Block-diagonal 0/1 group-sum matrix for the in-kernel atom softmax.
    idx = jnp.arange(a_pad)
    gmat = (idx[:, None] // num_atoms == idx[None, :] // num_atoms
            ).astype(jnp.float32)

    return dict(w_sup_big=w_sup_big, w_ori_big=w_ori_big,
                w_stat_pad=w_stat_pad, b_pad=b_pad, gmat=gmat,
                action_dim=action_dim)


def ts_feature_extractor_forward(observations, folded, *, num_atoms,
                                 state=None):
    x = ts_feature_head_fused(
        observations["sup_node_feature"],
        observations["ori_node_feature"],
        observations["statistic"],
        folded, num_atoms=num_atoms)
    return x, state


if __name__ == "__main__":
    key = jax.random.PRNGKey(0)

    # ---- small shapes consistent with the module's forward ------------------
    B = 2            # batch
    N = 8            # graph nodes per sample
    DN = 16          # node-feature dim
    DS = 16          # 'statistic' observation dim
    F_SUP = 32       # sup_feature_extractor.output_size
    F_ORI = 32       # ori_feature_extractor.output_size
    F_STAT = 16      # statistic_extractor.output_size
    F_TOTAL = F_SUP + F_ORI + F_STAT          # self.output_size = 80
    ACTION_SHAPE = 6
    NUM_ATOMS = 4
    ACTION_DIM = ACTION_SHAPE * NUM_ATOMS     # = 24

    ks = jax.random.split(key, 12)

    observations = {
        "sup_node_feature": jax.random.normal(ks[0], (B, N, DN), jnp.float32),
        "sup_edge_index": jnp.zeros((B, 2, N), jnp.int32),
        "sup_edge_feature": jnp.zeros((B, N, 4), jnp.float32),
        "sup_lens": jnp.full((B,), N, jnp.int32),
        "ori_node_feature": jax.random.normal(ks[1], (B, N, DN), jnp.float32),
        "ori_edge_index": jnp.zeros((B, 2, N), jnp.int32),
        "ori_edge_feature": jnp.zeros((B, N, 4), jnp.float32),
        "ori_lens": jnp.full((B,), N, jnp.int32),
        "statistic": jax.random.normal(ks[2], (B, DS), jnp.float32),
    }

    # deterministic synthetic sub-extractor + head parameters
    w_sup = jax.random.normal(ks[3], (DN, F_SUP), jnp.float32) * 0.1
    b_sup = jax.random.normal(ks[4], (F_SUP,), jnp.float32) * 0.1
    w_ori = jax.random.normal(ks[5], (DN, F_ORI), jnp.float32) * 0.1
    b_ori = jax.random.normal(ks[6], (F_ORI,), jnp.float32) * 0.1
    w_stat = jax.random.normal(ks[7], (DS, F_STAT), jnp.float32) * 0.1
    b_stat = jax.random.normal(ks[8], (F_STAT,), jnp.float32) * 0.1
    # self.linear = nn.Linear(self.output_size, action_dim)
    w_lin = jax.random.normal(ks[9], (F_TOTAL, ACTION_DIM), jnp.float32) * 0.1
    b_lin = (jax.random.normal(ks[10], (ACTION_DIM,), jnp.float32) * 0.1
             ).reshape(1, ACTION_DIM)

    # ---- forward (fused Pallas kernel) --------------------------------------
    folded = fold_params(w_sup, b_sup, w_ori, b_ori, w_stat, b_stat,
                         w_lin, b_lin, n_sup=N, n_ori=N, num_atoms=NUM_ATOMS)
    out, state = ts_feature_extractor_forward(observations, folded,
                                              num_atoms=NUM_ATOMS)
    out = jax.block_until_ready(out)

    # ---- pure-JAX reference (unfused, matches the PyTorch module) -----------
    sup_vec = jnp.mean(observations["sup_node_feature"], axis=1) @ w_sup + b_sup
    ori_vec = jnp.mean(observations["ori_node_feature"], axis=1) @ w_ori + b_ori
    stat_vec = observations["statistic"] @ w_stat + b_stat
    x_ref = jnp.concatenate([sup_vec, ori_vec, stat_vec], axis=1)
    y_ref = x_ref @ w_lin + b_lin
    y_ref = jax.nn.softmax(
        y_ref.reshape(B, ACTION_DIM // NUM_ATOMS, NUM_ATOMS), axis=-1)

    assert out.shape == (B, ACTION_DIM // NUM_ATOMS, NUM_ATOMS)
    assert bool(jnp.all(jnp.isfinite(out)))
    assert jnp.allclose(out, y_ref, atol=1e-4, rtol=1e-4)
    assert jnp.allclose(jnp.sum(out, axis=-1), 1.0, atol=1e-4)
    assert state is None

    print("KERNEL_OK")
</pallas_src>

<mosaic_0001>
module attributes {stable_mosaic.version = 11 : i64} {
  func.func @_ts_fused_kernel(%arg0: i32, %arg1: memref<8x128xf32, #tpu.memory_space<vmem>>, %arg2: memref<8x128xf32, #tpu.memory_space<vmem>>, %arg3: memref<8x16xf32, #tpu.memory_space<vmem>>, %arg4: memref<128x128xf32, #tpu.memory_space<vmem>>, %arg5: memref<128x128xf32, #tpu.memory_space<vmem>>, %arg6: memref<16x128xf32, #tpu.memory_space<vmem>>, %arg7: memref<1x128xf32, #tpu.memory_space<vmem>>, %arg8: memref<128x128xf32, #tpu.memory_space<vmem>>, %arg9: memref<8x128xf32, #tpu.memory_space<vmem>>) attributes {dimension_semantics = [#tpu.dimension_semantics<parallel>], iteration_bounds = array<i64: 1>, scalar_prefetch = 0 : i64, scratch_operands = 0 : i64, tpu.core_type = #tpu.core_type<tc>, window_params = [{transform_indices = @transform_0, window_bounds = array<i64: 8, 128>}, {transform_indices = @transform_1, window_bounds = array<i64: 8, 128>}, {transform_indices = @transform_2, window_bounds = array<i64: 8, 16>}, {pipeline_mode = #tpu.pipeline_mode<synchronous>, transform_indices = @transform_3, window_bounds = array<i64: 128, 128>}, {pipeline_mode = #tpu.pipeline_mode<synchronous>, transform_indices = @transform_4, window_bounds = array<i64: 128, 128>}, {pipeline_mode = #tpu.pipeline_mode<synchronous>, transform_indices = @transform_5, window_bounds = array<i64: 16, 128>}, {pipeline_mode = #tpu.pipeline_mode<synchronous>, transform_indices = @transform_6, window_bounds = array<i64: 1, 128>}, {pipeline_mode = #tpu.pipeline_mode<synchronous>, transform_indices = @transform_7, window_bounds = array<i64: 128, 128>}, {transform_indices = @transform_8, window_bounds = array<i64: 8, 128>}]} {
    %c0 = arith.constant 0 : index
    %c0_0 = arith.constant 0 : index
    %0 = vector.load %arg1[%c0, %c0_0] : memref<8x128xf32, #tpu.memory_space<vmem>>, vector<8x128xf32>
    %c0_1 = arith.constant 0 : index
    %c0_2 = arith.constant 0 : index
    %1 = vector.load %arg4[%c0_1, %c0_2] : memref<128x128xf32, #tpu.memory_space<vmem>>, vector<128x128xf32>
    %cst = arith.constant dense<0.000000e+00> : vector<8x128xf32>
    %2 = tpu.matmul %0, %1, %cst {dimension_numbers = #tpu.dot_dimension_numbers<[1], [0], [0], [1], [0, 0, 1, 1], [], []>} : vector<8x128xf32>, vector<128x128xf32>, vector<8x128xf32> -> vector<8x128xf32>
    %c0_3 = arith.constant 0 : index
    %c0_4 = arith.constant 0 : index
    %3 = vector.load %arg2[%c0_3, %c0_4] : memref<8x128xf32, #tpu.memory_space<vmem>>, vector<8x128xf32>
    %c0_5 = arith.constant 0 : index
    %c0_6 = arith.constant 0 : index
    %4 = vector.load %arg5[%c0_5, %c0_6] : memref<128x128xf32, #tpu.memory_space<vmem>>, vector<128x128xf32>
    %cst_7 = arith.constant dense<0.000000e+00> : vector<8x128xf32>
    %5 = tpu.matmul %3, %4, %cst_7 {dimension_numbers = #tpu.dot_dimension_numbers<[1], [0], [0], [1], [0, 0, 1, 1], [], []>} : vector<8x128xf32>, vector<128x128xf32>, vector<8x128xf32> -> vector<8x128xf32>
    %6 = arith.addf %2, %5 : vector<8x128xf32>
    %c0_8 = arith.constant 0 : index
    %c0_9 = arith.constant 0 : index
    %7 = vector.load %arg3[%c0_8, %c0_9] : memref<8x16xf32, #tpu.memory_space<vmem>>, vector<8x16xf32>
    %c0_10 = arith.constant 0 : index
    %c0_11 = arith.constant 0 : index
    %8 = vector.load %arg6[%c0_10, %c0_11] : memref<16x128xf32, #tpu.memory_space<vmem>>, vector<16x128xf32>
    %cst_12 = arith.constant dense<0.000000e+00> : vector<8x128xf32>
    %9 = tpu.matmul %7, %8, %cst_12 {dimension_numbers = #tpu.dot_dimension_numbers<[1], [0], [0], [1], [0, 0, 1, 1], [], []>} : vector<8x16xf32>, vector<16x128xf32>, vector<8x128xf32> -> vector<8x128xf32>
    %10 = arith.addf %6, %9 : vector<8x128xf32>
    %c0_13 = arith.constant 0 : index
    %c0_14 = arith.constant 0 : index
    %11 = vector.load %arg7[%c0_13, %c0_14] : memref<1x128xf32, #tpu.memory_space<vmem>>, vector<1x128xf32>
    %12 = vector.broadcast %11 : vector<1x128xf32> to vector<8x128xf32>
    %13 = arith.addf %10, %12 : vector<8x128xf32>
    %cst_15 = arith.constant dense<0xFF800000> : vector<8xf32>
    %14 = vector.multi_reduction <maximumf>, %13, %cst_15 [1] : vector<8x128xf32> to vector<8xf32>
    %15 = vector.shape_cast %14 : vector<8xf32> to vector<8x1xf32>
    %16 = vector.broadcast %15 : vector<8x1xf32> to vector<8x128xf32>
    %17 = arith.subf %13, %16 : vector<8x128xf32>
    %18 = math.exp %17 : vector<8x128xf32>
    %c0_16 = arith.constant 0 : index
    %c0_17 = arith.constant 0 : index
    %19 = vector.load %arg8[%c0_16, %c0_17] : memref<128x128xf32, #tpu.memory_space<vmem>>, vector<128x128xf32>
    %cst_18 = arith.constant dense<0.000000e+00> : vector<8x128xf32>
    %20 = tpu.matmul %18, %19, %cst_18 {dimension_numbers = #tpu.dot_dimension_numbers<[1], [0], [0], [1], [0, 0, 1, 1], [], []>} : vector<8x128xf32>, vector<128x128xf32>, vector<8x128xf32> -> vector<8x128xf32>
    %21 = arith.divf %18, %20 : vector<8x128xf32>
    %c0_19 = arith.constant 0 : index
    %c0_20 = arith.constant 0 : index
    %22 = vector.load %arg9[%c0_19, %c0_20] : memref<8x128xf32, #tpu.memory_space<vmem>>, vector<8x128xf32>
    tpu.vector_store %arg9[%c0_19, %c0_20], %21 {strides = array<i32>} : memref<8x128xf32, #tpu.memory_space<vmem>>, vector<8x128xf32>,
    return
  }
  func.func @transform_0(%arg0: i32) -> (i32, i32) {
    %c0_i32 = arith.constant 0 : i32
    %c0_i32_0 = arith.constant 0 : i32
    return %arg0, %c0_i32 : i32, i32
  }
  func.func @transform_1(%arg0: i32) -> (i32, i32) {
    %c0_i32 = arith.constant 0 : i32
    %c0_i32_0 = arith.constant 0 : i32
    return %arg0, %c0_i32 : i32, i32
  }
  func.func @transform_2(%arg0: i32) -> (i32, i32) {
    %c0_i32 = arith.constant 0 : i32
    %c0_i32_0 = arith.constant 0 : i32
    return %arg0, %c0_i32 : i32, i32
  }
  func.func @transform_3(%arg0: i32) -> (i32, i32) {
    %c0_i32 = arith.constant 0 : i32
    %c0_i32_0 = arith.constant 0 : i32
    %c0_i32_1 = arith.constant 0 : i32
    return %c0_i32, %c0_i32_0 : i32, i32
  }
  func.func @transform_4(%arg0: i32) -> (i32, i32) {
    %c0_i32 = arith.constant 0 : i32
    %c0_i32_0 = arith.constant 0 : i32
    %c0_i32_1 = arith.constant 0 : i32
    return %c0_i32, %c0_i32_0 : i32, i32
  }
  func.func @transform_5(%arg0: i32) -> (i32, i32) {
    %c0_i32 = arith.constant 0 : i32
    %c0_i32_0 = arith.constant 0 : i32
    %c0_i32_1 = arith.constant 0 : i32
    return %c0_i32, %c0_i32_0 : i32, i32
  }
  func.func @transform_6(%arg0: i32) -> (i32, i32) {
    %c0_i32 = arith.constant 0 : i32
    %c0_i32_0 = arith.constant 0 : i32
    %c0_i32_1 = arith.constant 0 : i32
    return %c0_i32, %c0_i32_0 : i32, i32
  }
  func.func @transform_7(%arg0: i32) -> (i32, i32) {
    %c0_i32 = arith.constant 0 : i32
    %c0_i32_0 = arith.constant 0 : i32
    %c0_i32_1 = arith.constant 0 : i32
    return %c0_i32, %c0_i32_0 : i32, i32
  }
  func.func @transform_8(%arg0: i32) -> (i32, i32) {
    %c0_i32 = arith.constant 0 : i32
    %c0_i32_0 = arith.constant 0 : i32
    return %arg0, %c0_i32 : i32, i32
  }
}

</mosaic_0001>

<llo_original>
// kernel: tpu_custom_call.1
$region0: #{tpu_custom_call.1}
  #allocation0 [shape = 'u32[]', space=smem, size = 0x4, offset = 0x4, fixed_abs, tag = 'smem constant byte address 0x4 - core index']
  #allocation1 [shape = 'u32[144,128]{1,0:T(1,128)}', space=vmem, size = 0x12000, scoped, tag = 'internal scratch']
  %s0 = inlined_call_operand.hbm [shape: f32[8,128], index: 0, kind: input, shape index: {}]
  %s1 = inlined_call_operand.hbm [shape: f32[8,128], index: 1, kind: input, shape index: {}]
  %s2 = inlined_call_operand.hbm [shape: f32[8,16], index: 2, kind: input, shape index: {}]
  %s3 = inlined_call_operand.hbm [shape: f32[128,128], index: 3, kind: input, shape index: {}]
  %s4 = inlined_call_operand.hbm [shape: f32[128,128], index: 4, kind: input, shape index: {}]
  %s5 = inlined_call_operand.hbm [shape: f32[16,128], index: 5, kind: input, shape index: {}]
  %s6 = inlined_call_operand.vmem [shape: f32[1,128], index: 6, kind: input, shape index: {}]
  %s7 = inlined_call_operand.hbm [shape: f32[128,128], index: 7, kind: input, shape index: {}]
  %s8 = inlined_call_operand.hbm [shape: f32[8,128], index: 8, kind: output, shape index: {}]
  %s9 = sld [smem:[#allocation0]]
  $region70: #{tpu_custom_call.1} parent=0
    _
  %s11 = ssub.s32 1, %s9
  %s12 = scalar_select 0, %s11, %s9
  $region1: #{tpu_custom_call.1} parent=0
    #allocation2 [shape = 'u8[4096]{0}', space=vmem, size = 0x1000, scoped, tag = 'input window, operand 0, single buffered']
    #allocation3 [shape = 's32[1]{0}', space=sflag, size = 0x4, scoped, tag = 'scoped memory for tpu_custom_call.1']
    #allocation4 [shape = 's32[1]{0}', space=sflag, size = 0x4, scoped, tag = 'scoped memory for tpu_custom_call.1']
    #allocation5 [shape = 'u8[4096]{0}', space=vmem, size = 0x1000, scoped, tag = 'input window, operand 1, single buffered']
    #allocation6 [shape = 's32[1]{0}', space=sflag, size = 0x4, scoped, tag = 'scoped memory for tpu_custom_call.1']
    #allocation7 [shape = 'u8[4096]{0}', space=vmem, size = 0x1000, scoped, tag = 'input window, operand 2, single buffered']
    #allocation8 [shape = 'u8[65536]{0}', space=vmem, size = 0x10000, scoped, tag = 'input window, operand 3, single buffered']
    #allocation9 [shape = 's32[1]{0}', space=sflag, size = 0x4, scoped, tag = 'scoped memory for tpu_custom_call.1']
    #allocation10 [shape = 'u8[65536]{0}', space=vmem, size = 0x10000, scoped, tag = 'input window, operand 4, single buffered']
    #allocation11 [shape = 'u8[8192]{0}', space=vmem, size = 0x2000, scoped, tag = 'input window, operand 5, single buffered']
    #allocation12 [shape = 's32[1]{0}', space=sflag, size = 0x4, scoped, tag = 'scoped memory for tpu_custom_call.1']
    #allocation13 [shape = 'u8[65536]{0}', space=vmem, size = 0x10000, scoped, tag = 'input window, operand 7, single buffered']
    #allocation14 [shape = 'u8[4096]{0}', space=vmem, size = 0x1000, scoped, tag = 'output window, operand 0, single buffered']
    %13 = vsyncpa [#allocation3], 0
    %14 = vsyncpa [#allocation6], 0
    %15 = vsyncpa [#allocation9], 0
    %16 = vsyncpa [#allocation12], 0
    %17 = vsyncpa [#allocation4], 0
    // Predicated region
    $region2: #{tpu_custom_call.1} parent=1 // pred_check
      _
    $region3: #{tpu_custom_call.1} parent=1 // pred_check_branch
      %19 = sbr.rel (0) target = $region5
    $region4: #{tpu_custom_call.1} parent=1 // pred_region
      %s21 = ssub.s32 128, 128
      %22 = vsyncadd [#allocation3], %s21
      %s24 = sshll.u32 [#allocation2], 4
      %s25 = int_to_ptr.vmem [resolvable:$true] %s24
      %27 = dma.hbm_to_vmem [thread:$0]  %s0, 128, %s25, [#allocation3]
    $region5: #{tpu_custom_call.1} parent=1 // pred_fallthru
      _
    // Predicated region
    $region6: #{tpu_custom_call.1} parent=1 // pred_check
      _
    $region7: #{tpu_custom_call.1} parent=1 // pred_check_branch
      %29 = sbr.rel (0) target = $region9
    $region8: #{tpu_custom_call.1} parent=1 // pred_region
      %s31 = ssub.s32 128, 128
      %32 = vsyncadd [#allocation6], %s31
      %s34 = sshll.u32 [#allocation5], 4
      %s35 = int_to_ptr.vmem [resolvable:$true] %s34
      %37 = dma.hbm_to_vmem [thread:$0]  %s1, 128, %s35, [#allocation6]
    $region9: #{tpu_custom_call.1} parent=1 // pred_fallthru
      _
    // Predicated region
    $region10: #{tpu_custom_call.1} parent=1 // pred_check
      _
    $region11: #{tpu_custom_call.1} parent=1 // pred_check_branch
      %39 = sbr.rel (0) target = $region13
    $region12: #{tpu_custom_call.1} parent=1 // pred_region
      %s41 = ssub.s32 128, 128
      %42 = vsyncadd [#allocation6], %s41
      %s44 = sshll.u32 [#allocation7], 4
      %s45 = int_to_ptr.vmem [resolvable:$true] %s44
      %47 = dma.hbm_to_vmem [thread:$0]  %s2, 128, %s45, [#allocation6]
    $region13: #{tpu_custom_call.1} parent=1 // pred_fallthru
      _
    // Predicated region
    $region14: #{tpu_custom_call.1} parent=1 // pred_check
      _
    $region15: #{tpu_custom_call.1} parent=1 // pred_check_branch
      %49 = sbr.rel (0) target = $region17
    $region16: #{tpu_custom_call.1} parent=1 // pred_region
      %s51 = ssub.s32 2048, 2048
      %52 = vsyncadd [#allocation9], %s51
      %s53 = sshll.u32 [#allocation8], 4
      %s54 = int_to_ptr.vmem [resolvable:$true] %s53
      %59 = dma.hbm_to_vmem [thread:$0]  %s3, 2048, %s54, [#allocation9], 128, 128, 8
    $region17: #{tpu_custom_call.1} parent=1 // pred_fallthru
      _
    // Predicated region
    $region18: #{tpu_custom_call.1} parent=1 // pred_check
      _
    $region19: #{tpu_custom_call.1} parent=1 // pred_check_branch
      %61 = sbr.rel (0) target = $region21
    $region20: #{tpu_custom_call.1} parent=1 // pred_region
      %s63 = ssub.s32 2048, 2048
      %64 = vsyncadd [#allocation9], %s63
      %s65 = sshll.u32 [#allocation10], 4
      %s66 = int_to_ptr.vmem [resolvable:$true] %s65
      %71 = dma.hbm_to_vmem [thread:$0]  %s4, 2048, %s66, [#allocation9], 128, 128, 8
    $region21: #{tpu_custom_call.1} parent=1 // pred_fallthru
      _
    // Predicated region
    $region22: #{tpu_custom_call.1} parent=1 // pred_check
      _
    $region23: #{tpu_custom_call.1} parent=1 // pred_check_branch
      %73 = sbr.rel (0) target = $region25
    $region24: #{tpu_custom_call.1} parent=1 // pred_region
      %s75 = ssub.s32 256, 256
      %76 = vsyncadd [#allocation12], %s75
      %s77 = sshll.u32 [#allocation11], 4
      %s78 = int_to_ptr.vmem [resolvable:$true] %s77
      %83 = dma.hbm_to_vmem [thread:$0]  %s5, 256, %s78, [#allocation12], 128, 128, 8
    $region25: #{tpu_custom_call.1} parent=1 // pred_fallthru
      _
    // Predicated region
    $region26: #{tpu_custom_call.1} parent=1 // pred_check
      _
    $region27: #{tpu_custom_call.1} parent=1 // pred_check_branch
      %85 = sbr.rel (0) target = $region29
    $region28: #{tpu_custom_call.1} parent=1 // pred_region
      _
    $region29: #{tpu_custom_call.1} parent=1 // pred_fallthru
      _
    // Predicated region
    $region30: #{tpu_custom_call.1} parent=1 // pred_check
      _
    $region31: #{tpu_custom_call.1} parent=1 // pred_check_branch
      %87 = sbr.rel (0) target = $region33
    $region32: #{tpu_custom_call.1} parent=1 // pred_region
      %s89 = ssub.s32 2048, 2048
      %90 = vsyncadd [#allocation12], %s89
      %s91 = sshll.u32 [#allocation13], 4
      %s92 = int_to_ptr.vmem [resolvable:$true] %s91
      %97 = dma.hbm_to_vmem [thread:$0]  %s7, 2048, %s92, [#allocation12], 128, 128, 8
    $region33: #{tpu_custom_call.1} parent=1 // pred_fallthru
      _
    // Predicated region
    $region34: #{tpu_custom_call.1} parent=1 // pred_check
      _
    $region35: #{tpu_custom_call.1} parent=1 // pred_check_branch
      %99 = sbr.rel (0) target = $region37
    $region36: #{tpu_custom_call.1} parent=1 // pred_region
      %100 = dma.done [#allocation3], 128
    $region37: #{tpu_custom_call.1} parent=1 // pred_fallthru
      _
    // Predicated region
    $region38: #{tpu_custom_call.1} parent=1 // pred_check
      _
    $region39: #{tpu_custom_call.1} parent=1 // pred_check_branch
      %102 = sbr.rel (0) target = $region41
    $region40: #{tpu_custom_call.1} parent=1 // pred_region
      %103 = dma.done [#allocation6], 128
    $region41: #{tpu_custom_call.1} parent=1 // pred_fallthru
      _
    // Predicated region
    $region42: #{tpu_custom_call.1} parent=1 // pred_check
      _
    $region43: #{tpu_custom_call.1} parent=1 // pred_check_branch
      %105 = sbr.rel (0) target = $region45
    $region44: #{tpu_custom_call.1} parent=1 // pred_region
      %106 = dma.done [#allocation6], 128
    $region45: #{tpu_custom_call.1} parent=1 // pred_fallthru
      _
    // Predicated region
    $region46: #{tpu_custom_call.1} parent=1 // pred_check
      _
    $region47: #{tpu_custom_call.1} parent=1 // pred_check_branch
      %108 = sbr.rel (0) target = $region49
    $region48: #{tpu_custom_call.1} parent=1 // pred_region
      %109 = dma.done [#allocation9], 2048
    $region49: #{tpu_custom_call.1} parent=1 // pred_fallthru
      _
    // Predicated region
    $region50: #{tpu_custom_call.1} parent=1 // pred_check
      _
    $region51: #{tpu_custom_call.1} parent=1 // pred_check_branch
      %111 = sbr.rel (0) target = $region53
    $region52: #{tpu_custom_call.1} parent=1 // pred_region
      %112 = dma.done [#allocation9], 2048
    $region53: #{tpu_custom_call.1} parent=1 // pred_fallthru
      _
    // Predicated region
    $region54: #{tpu_custom_call.1} parent=1 // pred_check
      _
    $region55: #{tpu_custom_call.1} parent=1 // pred_check_branch
      %114 = sbr.rel (0) target = $region57
    $region56: #{tpu_custom_call.1} parent=1 // pred_region
      %115 = dma.done [#allocation12], 256
    $region57: #{tpu_custom_call.1} parent=1 // pred_fallthru
      _
    // Predicated region
    $region58: #{tpu_custom_call.1} parent=1 // pred_check
      _
    $region59: #{tpu_custom_call.1} parent=1 // pred_check_branch
      %117 = sbr.rel (0) target = $region61
    $region60: #{tpu_custom_call.1} parent=1 // pred_region
      %118 = dma.done [#allocation12], 2048
    $region61: #{tpu_custom_call.1} parent=1 // pred_fallthru
      _
    %v119 = vld [vmem:[#allocation2] sm:$0xff]
    %v120 = vld [vmem:[#allocation8] sm:$0xff]
    %v121 = vld [vmem:[#allocation8 + $0x8] sm:$0xff]
    %v122 = vld [vmem:[#allocation8 + $0x10] sm:$0xff]
    %v123 = vld [vmem:[#allocation8 + $0x18] sm:$0xff]
    %v124 = vld [vmem:[#allocation8 + $0x20] sm:$0xff]
    %v125 = vld [vmem:[#allocation8 + $0x28] sm:$0xff]
    %v126 = vld [vmem:[#allocation8 + $0x30] sm:$0xff]
    %v127 = vld [vmem:[#allocation8 + $0x38] sm:$0xff]
    %v128 = vld [vmem:[#allocation8 + $0x40] sm:$0xff]
    %v129 = vld [vmem:[#allocation8 + $0x48] sm:$0xff]
    %v130 = vld [vmem:[#allocation8 + $0x50] sm:$0xff]
    %v131 = vld [vmem:[#allocation8 + $0x58] sm:$0xff]
    %v132 = vld [vmem:[#allocation8 + $0x60] sm:$0xff]
    %v133 = vld [vmem:[#allocation8 + $0x68] sm:$0xff]
    %v134 = vld [vmem:[#allocation8 + $0x70] sm:$0xff]
    %v135 = vld [vmem:[#allocation8 + $0x78] sm:$0xff]
    %v136 = vld [vmem:[#allocation5] sm:$0xff]
    %v137 = vld [vmem:[#allocation10] sm:$0xff]
    %v138 = vld [vmem:[#allocation10 + $0x8] sm:$0xff]
    %v139 = vld [vmem:[#allocation10 + $0x10] sm:$0xff]
    %v140 = vld [vmem:[#allocation10 + $0x18] sm:$0xff]
    %v141 = vld [vmem:[#allocation10 + $0x20] sm:$0xff]
    %v142 = vld [vmem:[#allocation10 + $0x28] sm:$0xff]
    %v143 = vld [vmem:[#allocation10 + $0x30] sm:$0xff]
    %v144 = vld [vmem:[#allocation10 + $0x38] sm:$0xff]
    %v145 = vld [vmem:[#allocation10 + $0x40] sm:$0xff]
    %v146 = vld [vmem:[#allocation10 + $0x48] sm:$0xff]
    %v147 = vld [vmem:[#allocation10 + $0x50] sm:$0xff]
    %v148 = vld [vmem:[#allocation10 + $0x58] sm:$0xff]
    %v149 = vld [vmem:[#allocation10 + $0x60] sm:$0xff]
    %v150 = vld [vmem:[#allocation10 + $0x68] sm:$0xff]
    %v151 = vld [vmem:[#allocation10 + $0x70] sm:$0xff]
    %v152 = vld [vmem:[#allocation10 + $0x78] sm:$0xff]
    %153 = vmatprep.subr.mxu0 0.0
    %154 = vmatpush1.msra.mxu0 %v152
    %155 = vmatprep.subr.mxu0 0.0
    %156 = vmatpush1.msra.mxu0 %v151
    %157 = vmatprep.subr.mxu0 0.0
    %158 = vmatpush1.msra.mxu0 %v150
    %159 = vmatprep.subr.mxu0 0.0
    %160 = vmatpush1.msra.mxu0 %v149
    %161 = vmatprep.subr.mxu0 0.0
    %162 = vmatpush1.msra.mxu0 %v148
    %163 = vmatprep.subr.mxu0 0.0
    %164 = vmatpush1.msra.mxu0 %v147
    %165 = vmatprep.subr.mxu0 0.0
    %166 = vmatpush1.msra.mxu0 %v146
    %167 = vmatprep.subr.mxu0 0.0
    %168 = vmatpush1.msra.mxu0 %v145
    %169 = vmatprep.subr.mxu0 0.0
    %170 = vmatpush1.msra.mxu0 %v144
    %171 = vmatprep.subr.mxu0 0.0
    %172 = vmatpush1.msra.mxu0 %v143
    %173 = vmatprep.subr.mxu0 0.0
    %174 = vmatpush1.msra.mxu0 %v142
    %175 = vmatprep.subr.mxu0 0.0
    %176 = vmatpush1.msra.mxu0 %v141
    %177 = vmatprep.subr.mxu0 0.0
    %178 = vmatpush1.msra.mxu0 %v140
    %179 = vmatprep.subr.mxu0 0.0
    %180 = vmatpush1.msra.mxu0 %v139
    %181 = vmatprep.subr.mxu0 0.0
    %182 = vmatpush1.msra.mxu0 %v138
    %183 = vmatprep.subr.mxu0 0.0
    %184 = vmatpush1.msra.mxu0 %v137
    %185 = vmatprep.subr.mxu0 0.0
    %186 = vmatpush2.msra.mxu0 0.0
    %187 = vmatprep.subr.mxu0 0.0
    %188 = vmatpush2.msra.mxu0 0.0
    %189 = vmatprep.subr.mxu0 0.0
    %190 = vmatpush2.msra.mxu0 0.0
    %191 = vmatprep.subr.mxu0 0.0
    %192 = vmatpush2.msra.mxu0 0.0
    %193 = vmatprep.subr.mxu0 0.0
    %194 = vmatpush2.msra.mxu0 0.0
    %195 = vmatprep.subr.mxu0 0.0
    %196 = vmatpush2.msra.mxu0 0.0
    %197 = vmatprep.subr.mxu0 0.0
    %198 = vmatpush2.msra.mxu0 0.0
    %199 = vmatprep.subr.mxu0 0.0
    %200 = vmatpush2.msra.mxu0 0.0
    %201 = vmatprep.subr.mxu0 0.0
    %202 = vmatpush2.msra.mxu0 0.0
    %203 = vmatprep.subr.mxu0 0.0
    %204 = vmatpush2.msra.mxu0 0.0
    %205 = vmatprep.subr.mxu0 0.0
    %206 = vmatpush2.msra.mxu0 0.0
    %207 = vmatprep.subr.mxu0 0.0
    %208 = vmatpush2.msra.mxu0 0.0
    %209 = vmatprep.subr.mxu0 0.0
    %210 = vmatpush2.msra.mxu0 0.0
    %211 = vmatprep.subr.mxu0 0.0
    %212 = vmatpush2.msra.mxu0 0.0
    %213 = vmatprep.subr.mxu0 0.0
    %214 = vmatpush2.msra.mxu0 0.0
    %215 = vmatprep.subr.mxu0 0.0
    %216 = vmatpush2.msra.mxu0 0.0
    %217 = vmatprep.mubr.f32.mxu0 0.0
    %218 = vmatmul.mubr.f32.gmra.mxu0 %v136
    %v219 = vpop.f32.mrf.mxu0
    %v220 = vadd.f32 0.0, %v219
    %v221 = vpop.f32.mrf.mxu0
    %222 = vdwg.mxu0
    %223 = vmatprep.subr.mxu0 0.0
    %224 = vmatpush1.msra.mxu0 %v135
    %225 = vmatprep.subr.mxu0 0.0
    %226 = vmatpush1.msra.mxu0 %v134
    %227 = vmatprep.subr.mxu0 0.0
    %228 = vmatpush1.msra.mxu0 %v133
    %229 = vmatprep.subr.mxu0 0.0
    %230 = vmatpush1.msra.mxu0 %v132
    %231 = vmatprep.subr.mxu0 0.0
    %232 = vmatpush1.msra.mxu0 %v131
    %233 = vmatprep.subr.mxu0 0.0
    %234 = vmatpush1.msra.mxu0 %v130
    %235 = vmatprep.subr.mxu0 0.0
    %236 = vmatpush1.msra.mxu0 %v129
    %237 = vmatprep.subr.mxu0 0.0
    %238 = vmatpush1.msra.mxu0 %v128
    %239 = vmatprep.subr.mxu0 0.0
    %240 = vmatpush1.msra.mxu0 %v127
    %241 = vmatprep.subr.mxu0 0.0
    %242 = vmatpush1.msra.mxu0 %v126
    %243 = vmatprep.subr.mxu0 0.0
    %244 = vmatpush1.msra.mxu0 %v125
    %245 = vmatprep.subr.mxu0 0.0
    %246 = vmatpush1.msra.mxu0 %v124
    %247 = vmatprep.subr.mxu0 0.0
    %248 = vmatpush1.msra.mxu0 %v123
    %249 = vmatprep.subr.mxu0 0.0
    %250 = vmatpush1.msra.mxu0 %v122
    %251 = vmatprep.subr.mxu0 0.0
    %252 = vmatpush1.msra.mxu0 %v121
    %253 = vmatprep.subr.mxu0 0.0
    %254 = vmatpush1.msra.mxu0 %v120
    %255 = vmatprep.subr.mxu0 0.0
    %256 = vmatpush2.msra.mxu0 0.0
    %257 = vmatprep.subr.mxu0 0.0
    %258 = vmatpush2.msra.mxu0 0.0
    %259 = vmatprep.subr.mxu0 0.0
    %260 = vmatpush2.msra.mxu0 0.0
    %261 = vmatprep.subr.mxu0 0.0
    %262 = vmatpush2.msra.mxu0 0.0
    %263 = vmatprep.subr.mxu0 0.0
    %264 = vmatpush2.msra.mxu0 0.0
    %265 = vmatprep.subr.mxu0 0.0
    %266 = vmatpush2.msra.mxu0 0.0
    %267 = vmatprep.subr.mxu0 0.0
    %268 = vmatpush2.msra.mxu0 0.0
    %269 = vmatprep.subr.mxu0 0.0
    %270 = vmatpush2.msra.mxu0 0.0
    %271 = vmatprep.subr.mxu0 0.0
    %272 = vmatpush2.msra.mxu0 0.0
    %273 = vmatprep.subr.mxu0 0.0
    %274 = vmatpush2.msra.mxu0 0.0
    %275 = vmatprep.subr.mxu0 0.0
    %276 = vmatpush2.msra.mxu0 0.0
    %277 = vmatprep.subr.mxu0 0.0
    %278 = vmatpush2.msra.mxu0 0.0
    %279 = vmatprep.subr.mxu0 0.0
    %280 = vmatpush2.msra.mxu0 0.0
    %281 = vmatprep.subr.mxu0 0.0
    %282 = vmatpush2.msra.mxu0 0.0
    %283 = vmatprep.subr.mxu0 0.0
    %284 = vmatpush2.msra.mxu0 0.0
    %285 = vmatprep.subr.mxu0 0.0
    %286 = vmatpush2.msra.mxu0 0.0
    %287 = vmatprep.mubr.f32.mxu0 0.0
    %288 = vmatmul.mubr.f32.gmra.mxu0 %v119
    %v289 = vpop.f32.mrf.mxu0
    %v290 = vadd.f32 %v220, %v289
    %v291 = vpop.f32.mrf.mxu0
    %292 = vdwg.mxu0
    %v293 = vld [vmem:[#allocation7] sm:$0xff]
    %v294 = vld [vmem:[#allocation11] sm:$0xff]
    %v295 = vld [vmem:[#allocation11 + $0x8] sm:$0xff]
    %vm296 = vcmask 130048
    %v298 = vsel %vm296, %v293, 0
    %300 = vmatprep.subr.mxu0 0.0
    %301 = vmatpush1.msra.mxu0 0.0
    %302 = vmatprep.subr.mxu0 0.0
    %303 = vmatpush1.msra.mxu0 0.0
    %304 = vmatprep.subr.mxu0 0.0
    %305 = vmatpush1.msra.mxu0 0.0
    %306 = vmatprep.subr.mxu0 0.0
    %307 = vmatpush1.msra.mxu0 0.0
    %308 = vmatprep.subr.mxu0 0.0
    %309 = vmatpush1.msra.mxu0 0.0
    %310 = vmatprep.subr.mxu0 0.0
    %311 = vmatpush1.msra.mxu0 0.0
    %312 = vmatprep.subr.mxu0 0.0
    %313 = vmatpush1.msra.mxu0 0.0
    %314 = vmatprep.subr.mxu0 0.0
    %315 = vmatpush1.msra.mxu0 0.0
    %316 = vmatprep.subr.mxu0 0.0
    %317 = vmatpush1.msra.mxu0 0.0
    %318 = vmatprep.subr.mxu0 0.0
    %319 = vmatpush1.msra.mxu0 0.0
    %320 = vmatprep.subr.mxu0 0.0
    %321 = vmatpush1.msra.mxu0 0.0
    %322 = vmatprep.subr.mxu0 0.0
    %323 = vmatpush1.msra.mxu0 0.0
    %324 = vmatprep.subr.mxu0 0.0
    %325 = vmatpush1.msra.mxu0 0.0
    %326 = vmatprep.subr.mxu0 0.0
    %327 = vmatpush1.msra.mxu0 0.0
    %328 = vmatprep.subr.mxu0 0.0
    %329 = vmatpush1.msra.mxu0 %v295
    %330 = vmatprep.subr.mxu0 0.0
    %331 = vmatpush1.msra.mxu0 %v294
    %332 = vmatprep.subr.mxu0 0.0
    %333 = vmatpush2.msra.mxu0 0.0
    %334 = vmatprep.subr.mxu0 0.0
    %335 = vmatpush2.msra.mxu0 0.0
    %336 = vmatprep.subr.mxu0 0.0
    %337 = vmatpush2.msra.mxu0 0.0
    %338 = vmatprep.subr.mxu0 0.0
    %339 = vmatpush2.msra.mxu0 0.0
    %340 = vmatprep.subr.mxu0 0.0
    %341 = vmatpush2.msra.mxu0 0.0
    %342 = vmatprep.subr.mxu0 0.0
    %343 = vmatpush2.msra.mxu0 0.0
    %344 = vmatprep.subr.mxu0 0.0
    %345 = vmatpush2.msra.mxu0 0.0
    %346 = vmatprep.subr.mxu0 0.0
    %347 = vmatpush2.msra.mxu0 0.0
    %348 = vmatprep.subr.mxu0 0.0
    %349 = vmatpush2.msra.mxu0 0.0
    %350 = vmatprep.subr.mxu0 0.0
    %351 = vmatpush2.msra.mxu0 0.0
    %352 = vmatprep.subr.mxu0 0.0
    %353 = vmatpush2.msra.mxu0 0.0
    %354 = vmatprep.subr.mxu0 0.0
    %355 = vmatpush2.msra.mxu0 0.0
    %356 = vmatprep.subr.mxu0 0.0
    %357 = vmatpush2.msra.mxu0 0.0
    %358 = vmatprep.subr.mxu0 0.0
    %359 = vmatpush2.msra.mxu0 0.0
    %360 = vmatprep.subr.mxu0 0.0
    %361 = vmatpush2.msra.mxu0 0.0
    %362 = vmatprep.subr.mxu0 0.0
    %363 = vmatpush2.msra.mxu0 0.0
    %364 = vmatprep.mubr.f32.mxu0 0.0
    %365 = vmatmul.mubr.f32.gmra.mxu0 %v298
    %v366 = vpop.f32.mrf.mxu0
    %v367 = vadd.f32 0.0, %v366
    %v368 = vpop.f32.mrf.mxu0
    %369 = vdwg.mxu0
    %v370 = vadd.f32 %v290, %v367
    %v371 = vld [vmem:[%s6] sm:$0x1]
    %v373 = vlaneseq
    %v374 = vshrl.u32 %v373, 7
    %v375 = vsub.s32 0, %v374
    %v376 = vrot.slane %v371, %v375
    %v378 = vadd.f32 %v370, %v376
    %379 = vmax.xlane.f32.xlu0 %v378
    %v380 = vpop.xlane.xlu0 %379
    %v381 = vsub.f32 %v378, %v380
    %v382 = vmul.f32 %v381, 1.442695
    %v383 = vpow.pop %v382
    %v384 = vld [vmem:[#allocation13] sm:$0xff]
    %v385 = vld [vmem:[#allocation13 + $0x8] sm:$0xff]
    %v386 = vld [vmem:[#allocation13 + $0x10] sm:$0xff]
    %v387 = vld [vmem:[#allocation13 + $0x18] sm:$0xff]
    %v388 = vld [vmem:[#allocation13 + $0x20] sm:$0xff]
    %v389 = vld [vmem:[#allocation13 + $0x28] sm:$0xff]
    %v390 = vld [vmem:[#allocation13 + $0x30] sm:$0xff]
    %v391 = vld [vmem:[#allocation13 + $0x38] sm:$0xff]
    %v392 = vld [vmem:[#allocation13 + $0x40] sm:$0xff]
    %v393 = vld [vmem:[#allocation13 + $0x48] sm:$0xff]
    %v394 = vld [vmem:[#allocation13 + $0x50] sm:$0xff]
    %v395 = vld [vmem:[#allocation13 + $0x58] sm:$0xff]
    %v396 = vld [vmem:[#allocation13 + $0x60] sm:$0xff]
    %v397 = vld [vmem:[#allocation13 + $0x68] sm:$0xff]
    %v398 = vld [vmem:[#allocation13 + $0x70] sm:$0xff]
    %v399 = vld [vmem:[#allocation13 + $0x78] sm:$0xff]
    %400 = vmatprep.subr.mxu0 0.0
    %401 = vmatpush1.msra.mxu0 %v399
    %402 = vmatprep.subr.mxu0 0.0
    %403 = vmatpush1.msra.mxu0 %v398
    %404 = vmatprep.subr.mxu0 0.0
    %405 = vmatpush1.msra.mxu0 %v397
    %406 = vmatprep.subr.mxu0 0.0
    %407 = vmatpush1.msra.mxu0 %v396
    %408 = vmatprep.subr.mxu0 0.0
    %409 = vmatpush1.msra.mxu0 %v395
    %410 = vmatprep.subr.mxu0 0.0
    %411 = vmatpush1.msra.mxu0 %v394
    %412 = vmatprep.subr.mxu0 0.0
    %413 = vmatpush1.msra.mxu0 %v393
    %414 = vmatprep.subr.mxu0 0.0
    %415 = vmatpush1.msra.mxu0 %v392
    %416 = vmatprep.subr.mxu0 0.0
    %417 = vmatpush1.msra.mxu0 %v391
    %418 = vmatprep.subr.mxu0 0.0
    %419 = vmatpush1.msra.mxu0 %v390
    %420 = vmatprep.subr.mxu0 0.0
    %421 = vmatpush1.msra.mxu0 %v389
    %422 = vmatprep.subr.mxu0 0.0
    %423 = vmatpush1.msra.mxu0 %v388
    %424 = vmatprep.subr.mxu0 0.0
    %425 = vmatpush1.msra.mxu0 %v387
    %426 = vmatprep.subr.mxu0 0.0
    %427 = vmatpush1.msra.mxu0 %v386
    %428 = vmatprep.subr.mxu0 0.0
    %429 = vmatpush1.msra.mxu0 %v385
    %430 = vmatprep.subr.mxu0 0.0
    %431 = vmatpush1.msra.mxu0 %v384
    %432 = vmatprep.subr.mxu0 0.0
    %433 = vmatpush2.msra.mxu0 0.0
    %434 = vmatprep.subr.mxu0 0.0
    %435 = vmatpush2.msra.mxu0 0.0
    %436 = vmatprep.subr.mxu0 0.0
    %437 = vmatpush2.msra.mxu0 0.0
    %438 = vmatprep.subr.mxu0 0.0
    %439 = vmatpush2.msra.mxu0 0.0
    %440 = vmatprep.subr.mxu0 0.0
    %441 = vmatpush2.msra.mxu0 0.0
    %442 = vmatprep.subr.mxu0 0.0
    %443 = vmatpush2.msra.mxu0 0.0
    %444 = vmatprep.subr.mxu0 0.0
    %445 = vmatpush2.msra.mxu0 0.0
    %446 = vmatprep.subr.mxu0 0.0
    %447 = vmatpush2.msra.mxu0 0.0
    %448 = vmatprep.subr.mxu0 0.0
    %449 = vmatpush2.msra.mxu0 0.0
    %450 = vmatprep.subr.mxu0 0.0
    %451 = vmatpush2.msra.mxu0 0.0
    %452 = vmatprep.subr.mxu0 0.0
    %453 = vmatpush2.msra.mxu0 0.0
    %454 = vmatprep.subr.mxu0 0.0
    %455 = vmatpush2.msra.mxu0 0.0
    %456 = vmatprep.subr.mxu0 0.0
    %457 = vmatpush2.msra.mxu0 0.0
    %458 = vmatprep.subr.mxu0 0.0
    %459 = vmatpush2.msra.mxu0 0.0
    %460 = vmatprep.subr.mxu0 0.0
    %461 = vmatpush2.msra.mxu0 0.0
    %462 = vmatprep.subr.mxu0 0.0
    %463 = vmatpush2.msra.mxu0 0.0
    %464 = vmatprep.mubr.f32.mxu0 0.0
    %465 = vmatmul.mubr.f32.gmra.mxu0 %v383
    %v466 = vpop.f32.mrf.mxu0
    %v467 = vadd.f32 0.0, %v466
    %v468 = vpop.f32.mrf.mxu0
    %469 = vdwg.mxu0
    %v470 = vrcp.pop %v467
    %v471 = vmul.f32 %v383, %v470
    %472 = vst [vmem:[#allocation14] sm:$0xff] %v471
    // Predicated region
    $region62: #{tpu_custom_call.1} parent=1 // pred_check
      _
    $region63: #{tpu_custom_call.1} parent=1 // pred_check_branch
      %474 = sbr.rel (0) target = $region65
    $region64: #{tpu_custom_call.1} parent=1 // pred_region
      %s476 = ssub.s32 128, 128
      %477 = vsyncadd [#allocation4], %s476
      %s479 = sshll.u32 [#allocation14], 4
      %s480 = int_to_ptr.vmem [resolvable:$true] %s479
      %482 = dma.vmem_to_hbm [thread:$0]  %s480, 128, %s8, [#allocation4]
    $region65: #{tpu_custom_call.1} parent=1 // pred_fallthru
      _
    // Predicated region
    $region66: #{tpu_custom_call.1} parent=1 // pred_check
      _
    $region67: #{tpu_custom_call.1} parent=1 // pred_check_branch
      %484 = sbr.rel (0) target = $region69
    $region68: #{tpu_custom_call.1} parent=1 // pred_region
      %485 = dma.done [#allocation4], 128
    $region69: #{tpu_custom_call.1} parent=1 // pred_fallthru
      _
    %486 = vsyncpa [#allocation3], 1
    %487 = vsyncpa [#allocation6], 1
    %488 = vsyncpa [#allocation9], 1
    %489 = vsyncpa [#allocation12], 1
    %490 = vsyncpa [#allocation4], 1

</llo_original>
